<compile_context>
chip_gen: v6e
topology: v6e:2x2x1
jax: 0.10.0
libtpu: 0.0.40
codegen_flags: <defaults>
</compile_context>

<pallas_src>
import jax
import jax.numpy as jnp
from jax import lax
from jax.experimental import pallas as pl
from jax.experimental.pallas import tpu as pltpu


def _disc_kernel(x_ref, lbl_ref, w1a_ref, w1b_ref, b1_ref, w2t8_ref, b2_ref, o_ref):
    # x_ref  : (TB, Dx)      lbl_ref : (TB, Dl)
    # w1a_ref: (Dx, 128)     w1b_ref : (Dl, 128)   b1_ref: (1, 128)
    # w2t8_ref: (8, 128)  (row 0 = w2^T, rows 1..7 zero)
    # b2_ref : (1, 1)        o_ref   : (1, TB)   (batch along lanes)

    # Linear 1 with fused concat: [x | label] @ w1 == x @ w1a + label @ w1b
    h = (
        jnp.dot(x_ref[...], w1a_ref[...], preferred_element_type=jnp.float32)
        + jnp.dot(lbl_ref[...], w1b_ref[...], preferred_element_type=jnp.float32)
        + b1_ref[...]
    )                                                   # (TB, 128) f32

    # LeakyReLU(0.01): mul + max (exactly equivalent to where for slope < 1).
    h = jnp.maximum(h, 0.01 * h)

    # Linear 2, produced transposed (batch -> lanes): z8[r, t] = sum_k w2t8[r,k]*h[t,k].
    # Row 0 is the real score row; rows 1..7 are padding so the MXU operand is
    # sublane-aligned.  This is the standard NT (rhs-transposed) matmul pattern.
    z8 = lax.dot_general(
        w2t8_ref[...], h,
        dimension_numbers=(((1,), (1,)), ((), ())),
        preferred_element_type=jnp.float32,
    )                                                   # (8, TB)
    z = z8[0:1, :] + b2_ref[...]                        # (1, TB), lane-dense

    # Sigmoid on the dense row (exp lowers to the EUP slot). For very negative z,
    # exp(-z) -> inf and the result correctly saturates to 0 (no NaN).
    o_ref[...] = (1.0 / (1.0 + jnp.exp(-z))).astype(o_ref.dtype)


def _round_up(v, m):
    return ((v + m - 1) // m) * m


def _pick_batch_tile(batch, *, tb_max=4096, split_threshold=8192, target_tiles=4):
    """Batch tile: multiple of 8, big (amortize per-step overhead / stay near HBM
    roofline) but split into >= target_tiles steps for large batches (megacore)."""
    if batch >= split_threshold:
        tb = _round_up(-(-batch // target_tiles), 8)
    else:
        tb = _round_up(max(batch, 1), 8)
    return max(8, min(tb, tb_max))


def prepare_params(params, dx):
    """Hoist per-call weight prep: split w1 for the fused concat, pad w2^T to 8 rows."""
    w1, b1, w2, b2 = params
    hidden = w1.shape[1]
    w1a = w1[:dx]                                        # (Dx, hidden)
    w1b = w1[dx:]                                        # (Dl, hidden)
    b1 = jnp.reshape(b1, (1, hidden))
    w2t8 = jnp.zeros((8, hidden), w2.dtype).at[0].set(jnp.reshape(w2, (hidden,)))
    b2 = jnp.reshape(b2, (1, 1))
    return (w1a, w1b, b1, w2t8, b2)


def discriminator_forward(x, label, prepared, *, tb_max=4096):
    """x: (B, Dx), label: (B, Dl). Returns sigmoid scores of shape (B, 1)."""
    w1a, w1b, b1, w2t8, b2 = prepared
    B, dx = x.shape
    dl = label.shape[1]
    hidden = w1a.shape[1]

    tb = _pick_batch_tile(B, tb_max=tb_max)
    nb = -(-B // tb)                                     # cdiv; no wrapper-side padding

    grid_spec = pltpu.PrefetchScalarGridSpec(
        num_scalar_prefetch=0,
        grid=(nb,),
        in_specs=[
            pl.BlockSpec((tb, dx), lambda i: (i, 0)),        # x tile (streamed)
            pl.BlockSpec((tb, dl), lambda i: (i, 0)),        # label tile (streamed)
            pl.BlockSpec((dx, hidden), lambda i: (0, 0)),    # w1a (VMEM resident)
            pl.BlockSpec((dl, hidden), lambda i: (0, 0)),    # w1b (VMEM resident)
            pl.BlockSpec((1, hidden), lambda i: (0, 0)),     # b1  (VMEM resident)
            pl.BlockSpec((8, hidden), lambda i: (0, 0)),     # w2^T padded (resident)
            pl.BlockSpec((1, 1), lambda i: (0, 0)),          # b2  (resident)
        ],
        # Lane-dense output: one (1, tb) row per grid step; leading dim squeezed.
        out_specs=pl.BlockSpec((None, 1, tb), lambda i: (i, 0, 0)),
    )

    out = pl.pallas_call(
        _disc_kernel,
        out_shape=jax.ShapeDtypeStruct((nb, 1, tb), jnp.float32),
        grid_spec=grid_spec,
        compiler_params=pltpu.CompilerParams(
            dimension_semantics=("parallel",),
        ),
    )(x, label, w1a, w1b, b1, w2t8, b2)

    # (nb, 1, tb) -> (nb*tb, 1); rows >= B (ragged tail) are discarded.
    return out.reshape(nb * tb, 1)[:B]


def init_params(key, in_features, hidden=128):
    """Deterministic init mimicking torch.nn.Linear default (uniform +-1/sqrt(fan_in))."""
    k1, k2, k3, k4 = jax.random.split(key, 4)
    lim1 = 1.0 / jnp.sqrt(jnp.float32(in_features))
    lim2 = 1.0 / jnp.sqrt(jnp.float32(hidden))
    w1 = jax.random.uniform(k1, (in_features, hidden), jnp.float32, -lim1, lim1)
    b1 = jax.random.uniform(k2, (1, hidden), jnp.float32, -lim1, lim1)
    w2 = jax.random.uniform(k3, (hidden, 1), jnp.float32, -lim2, lim2)
    b2 = jax.random.uniform(k4, (1, 1), jnp.float32, -lim2, lim2)
    return (w1, b1, w2, b2)


def _reference_forward(x, label, params):
    w1, b1, w2, b2 = params
    xc = jnp.concatenate([x, label], axis=1)
    h = xc @ w1 + b1.reshape(1, -1)
    h = jnp.where(h > 0, h, 0.01 * h)
    z = h @ w2 + b2.reshape(1, 1)
    return jax.nn.sigmoid(z)


if __name__ == "__main__":
    key = jax.random.PRNGKey(0)
    kx, kl, kp = jax.random.split(key, 3)

    B, Dx, Dl = 8, 16, 16              # in_features = Dx + Dl = 32
    x = jax.random.normal(kx, (B, Dx), jnp.float32)
    label = jax.random.normal(kl, (B, Dl), jnp.float32)
    params = init_params(kp, Dx + Dl)
    prepared = prepare_params(params, Dx)

    out = jax.block_until_ready(discriminator_forward(x, label, prepared))
    ref = _reference_forward(x, label, params)
    assert out.shape == (B, 1)
    assert jnp.allclose(out, ref, atol=1e-5, rtol=1e-5), (
        float(jnp.max(jnp.abs(out - ref)))
    )

    # Second check: batch not a multiple of the tile (exercises the no-pad ragged path).
    B2 = 300
    kx2, kl2 = jax.random.split(kx)
    x2 = jax.random.normal(kx2, (B2, Dx), jnp.float32)
    l2 = jax.random.normal(kl2, (B2, Dl), jnp.float32)
    out2 = jax.block_until_ready(discriminator_forward(x2, l2, prepared))
    ref2 = _reference_forward(x2, l2, params)
    assert out2.shape == (B2, 1)
    assert jnp.allclose(out2, ref2, atol=1e-5, rtol=1e-5), (
        float(jnp.max(jnp.abs(out2 - ref2)))
    )

    print("KERNEL_OK")
</pallas_src>

<mosaic_0001>
module attributes {stable_mosaic.version = 11 : i64} {
  func.func @_disc_kernel(%arg0: i32, %arg1: memref<8x16xf32, #tpu.memory_space<vmem>>, %arg2: memref<8x16xf32, #tpu.memory_space<vmem>>, %arg3: memref<16x128xf32, #tpu.memory_space<vmem>>, %arg4: memref<16x128xf32, #tpu.memory_space<vmem>>, %arg5: memref<1x128xf32, #tpu.memory_space<vmem>>, %arg6: memref<8x128xf32, #tpu.memory_space<vmem>>, %arg7: memref<1x1xf32, #tpu.memory_space<vmem>>, %arg8: memref<1x1x8xf32, #tpu.memory_space<vmem>>) attributes {dimension_semantics = [#tpu.dimension_semantics<parallel>], iteration_bounds = array<i64: 1>, scalar_prefetch = 0 : i64, scratch_operands = 0 : i64, tpu.core_type = #tpu.core_type<tc>, window_params = [{transform_indices = @transform_0, window_bounds = array<i64: 8, 16>}, {transform_indices = @transform_1, window_bounds = array<i64: 8, 16>}, {pipeline_mode = #tpu.pipeline_mode<synchronous>, transform_indices = @transform_2, window_bounds = array<i64: 16, 128>}, {pipeline_mode = #tpu.pipeline_mode<synchronous>, transform_indices = @transform_3, window_bounds = array<i64: 16, 128>}, {pipeline_mode = #tpu.pipeline_mode<synchronous>, transform_indices = @transform_4, window_bounds = array<i64: 1, 128>}, {pipeline_mode = #tpu.pipeline_mode<synchronous>, transform_indices = @transform_5, window_bounds = array<i64: 8, 128>}, {pipeline_mode = #tpu.pipeline_mode<synchronous>, transform_indices = @transform_6, window_bounds = array<i64: 1, 1>}, {transform_indices = @transform_7, window_bounds = array<i64: 1, 1, 8>}]} {
    %c0 = arith.constant 0 : index
    %c0_0 = arith.constant 0 : index
    %0 = vector.load %arg1[%c0, %c0_0] : memref<8x16xf32, #tpu.memory_space<vmem>>, vector<8x16xf32>
    %c0_1 = arith.constant 0 : index
    %c0_2 = arith.constant 0 : index
    %1 = vector.load %arg3[%c0_1, %c0_2] : memref<16x128xf32, #tpu.memory_space<vmem>>, vector<16x128xf32>
    %cst = arith.constant dense<0.000000e+00> : vector<8x128xf32>
    %2 = tpu.matmul %0, %1, %cst {dimension_numbers = #tpu.dot_dimension_numbers<[1], [0], [0], [1], [0, 0, 1, 1], [], []>} : vector<8x16xf32>, vector<16x128xf32>, vector<8x128xf32> -> vector<8x128xf32>
    %c0_3 = arith.constant 0 : index
    %c0_4 = arith.constant 0 : index
    %3 = vector.load %arg2[%c0_3, %c0_4] : memref<8x16xf32, #tpu.memory_space<vmem>>, vector<8x16xf32>
    %c0_5 = arith.constant 0 : index
    %c0_6 = arith.constant 0 : index
    %4 = vector.load %arg4[%c0_5, %c0_6] : memref<16x128xf32, #tpu.memory_space<vmem>>, vector<16x128xf32>
    %cst_7 = arith.constant dense<0.000000e+00> : vector<8x128xf32>
    %5 = tpu.matmul %3, %4, %cst_7 {dimension_numbers = #tpu.dot_dimension_numbers<[1], [0], [0], [1], [0, 0, 1, 1], [], []>} : vector<8x16xf32>, vector<16x128xf32>, vector<8x128xf32> -> vector<8x128xf32>
    %6 = arith.addf %2, %5 : vector<8x128xf32>
    %c0_8 = arith.constant 0 : index
    %c0_9 = arith.constant 0 : index
    %7 = vector.load %arg5[%c0_8, %c0_9] : memref<1x128xf32, #tpu.memory_space<vmem>>, vector<1x128xf32>
    %8 = vector.broadcast %7 : vector<1x128xf32> to vector<8x128xf32>
    %9 = arith.addf %6, %8 : vector<8x128xf32>
    %cst_10 = arith.constant 0.00999999977 : f32
    %10 = vector.broadcast %cst_10 : f32 to vector<8x128xf32>
    %11 = arith.mulf %10, %9 : vector<8x128xf32>
    %12 = arith.maximumf %9, %11 : vector<8x128xf32>
    %c0_11 = arith.constant 0 : index
    %c0_12 = arith.constant 0 : index
    %13 = vector.load %arg6[%c0_11, %c0_12] : memref<8x128xf32, #tpu.memory_space<vmem>>, vector<8x128xf32>
    %cst_13 = arith.constant dense<0.000000e+00> : vector<8x8xf32>
    %14 = tpu.matmul %13, %12, %cst_13 {dimension_numbers = #tpu.dot_dimension_numbers<[1], [1], [0], [0], [0, 0, 1, 0], [], []>} : vector<8x128xf32>, vector<8x128xf32>, vector<8x8xf32> -> vector<8x8xf32>
    %15 = vector.extract_strided_slice %14 {offsets = [0, 0], sizes = [1, 8], strides = [1, 1]} : vector<8x8xf32> to vector<1x8xf32>
    %c0_14 = arith.constant 0 : index
    %c0_15 = arith.constant 0 : index
    %16 = vector.load %arg7[%c0_14, %c0_15] : memref<1x1xf32, #tpu.memory_space<vmem>>, vector<1x1xf32>
    %17 = vector.broadcast %16 : vector<1x1xf32> to vector<1x8xf32>
    %18 = arith.addf %15, %17 : vector<1x8xf32>
    %cst_16 = arith.constant 0.000000e+00 : f32
    %19 = vector.broadcast %cst_16 : f32 to vector<1x8xf32>
    %20 = arith.subf %19, %18 : vector<1x8xf32>
    %21 = math.exp %20 : vector<1x8xf32>
    %cst_17 = arith.constant 1.000000e+00 : f32
    %22 = vector.broadcast %cst_17 : f32 to vector<1x8xf32>
    %23 = arith.addf %22, %21 : vector<1x8xf32>
    %cst_18 = arith.constant 1.000000e+00 : f32
    %24 = vector.broadcast %cst_18 : f32 to vector<1x8xf32>
    %25 = arith.divf %24, %23 : vector<1x8xf32>
    %c0_19 = arith.constant 0 : index
    %c0_20 = arith.constant 0 : index
    %c0_21 = arith.constant 0 : index
    %26 = vector.load %arg8[%c0_19, %c0_20, %c0_21] : memref<1x1x8xf32, #tpu.memory_space<vmem>>, vector<1x1x8xf32>
    %27 = vector.shape_cast %26 : vector<1x1x8xf32> to vector<1x8xf32>
    %28 = vector.shape_cast %25 : vector<1x8xf32> to vector<1x1x8xf32>
    tpu.vector_store %arg8[%c0_19, %c0_20, %c0_21], %28 {strides = array<i32>} : memref<1x1x8xf32, #tpu.memory_space<vmem>>, vector<1x1x8xf32>,
    return
  }
  func.func @transform_0(%arg0: i32) -> (i32, i32) {
    %c0_i32 = arith.constant 0 : i32
    %c0_i32_0 = arith.constant 0 : i32
    return %arg0, %c0_i32 : i32, i32
  }
  func.func @transform_1(%arg0: i32) -> (i32, i32) {
    %c0_i32 = arith.constant 0 : i32
    %c0_i32_0 = arith.constant 0 : i32
    return %arg0, %c0_i32 : i32, i32
  }
  func.func @transform_2(%arg0: i32) -> (i32, i32) {
    %c0_i32 = arith.constant 0 : i32
    %c0_i32_0 = arith.constant 0 : i32
    %c0_i32_1 = arith.constant 0 : i32
    return %c0_i32, %c0_i32_0 : i32, i32
  }
  func.func @transform_3(%arg0: i32) -> (i32, i32) {
    %c0_i32 = arith.constant 0 : i32
    %c0_i32_0 = arith.constant 0 : i32
    %c0_i32_1 = arith.constant 0 : i32
    return %c0_i32, %c0_i32_0 : i32, i32
  }
  func.func @transform_4(%arg0: i32) -> (i32, i32) {
    %c0_i32 = arith.constant 0 : i32
    %c0_i32_0 = arith.constant 0 : i32
    %c0_i32_1 = arith.constant 0 : i32
    return %c0_i32, %c0_i32_0 : i32, i32
  }
  func.func @transform_5(%arg0: i32) -> (i32, i32) {
    %c0_i32 = arith.constant 0 : i32
    %c0_i32_0 = arith.constant 0 : i32
    %c0_i32_1 = arith.constant 0 : i32
    return %c0_i32, %c0_i32_0 : i32, i32
  }
  func.func @transform_6(%arg0: i32) -> (i32, i32) {
    %c0_i32 = arith.constant 0 : i32
    %c0_i32_0 = arith.constant 0 : i32
    %c0_i32_1 = arith.constant 0 : i32
    return %c0_i32, %c0_i32_0 : i32, i32
  }
  func.func @transform_7(%arg0: i32) -> (i32, i32, i32) {
    %c0_i32 = arith.constant 0 : i32
    %c0_i32_0 = arith.constant 0 : i32
    %c0_i32_1 = arith.constant 0 : i32
    return %arg0, %c0_i32, %c0_i32_0 : i32, i32, i32
  }
}

</mosaic_0001>

<llo_original>
// kernel: tpu_custom_call.1
$region0: #{tpu_custom_call.1}
  #allocation0 [shape = 'u32[]', space=smem, size = 0x4, offset = 0x4, fixed_abs, tag = 'smem constant byte address 0x4 - core index']
  #allocation1 [shape = 'u32[144,128]{1,0:T(1,128)}', space=vmem, size = 0x12000, scoped, tag = 'internal scratch']
  #allocation2 [shape = 'f32[1,1]{1,0:T(1,128)S(1)}', space=vmem, size = 0x200, scoped, tag = 'scoped memory for tpu_custom_call.1']
  %s0 = inlined_call_operand.hbm [shape: f32[8,16], index: 0, kind: input, shape index: {}]
  %s1 = inlined_call_operand.hbm [shape: f32[8,16], index: 1, kind: input, shape index: {}]
  %s2 = inlined_call_operand.hbm [shape: f32[16,128], index: 2, kind: input, shape index: {}]
  %s3 = inlined_call_operand.hbm [shape: f32[16,128], index: 3, kind: input, shape index: {}]
  %s4 = inlined_call_operand.vmem [shape: f32[1,128], index: 4, kind: input, shape index: {}]
  %s5 = inlined_call_operand.vmem [shape: f32[8,128], index: 5, kind: input, shape index: {}]
  %s6 = inlined_call_operand.<no memory space> [shape: f32[1,1], index: 6, kind: input, shape index: {}]
  %s7 = inlined_call_operand.hbm [shape: f32[1,1,8], index: 7, kind: output, shape index: {}]
  %s8 = sld [smem:[#allocation0]]
  $region54: #{tpu_custom_call.1} parent=0
    _
  %s10 = ssub.s32 1, %s8
  %s11 = scalar_select 0, %s10, %s8
  %v12 = vstv %s6
  %13 = vst [vmem:[#allocation2] sm:$0x1] %v12
  $region1: #{tpu_custom_call.1} parent=0
    #allocation3 [shape = 'u8[4096]{0}', space=vmem, size = 0x1000, scoped, tag = 'input window, operand 0, single buffered']
    #allocation4 [shape = 's32[1]{0}', space=sflag, size = 0x4, scoped, tag = 'scoped memory for tpu_custom_call.1']
    #allocation5 [shape = 's32[1]{0}', space=sflag, size = 0x4, scoped, tag = 'scoped memory for tpu_custom_call.1']
    #allocation6 [shape = 'u8[4096]{0}', space=vmem, size = 0x1000, scoped, tag = 'input window, operand 1, single buffered']
    #allocation7 [shape = 's32[1]{0}', space=sflag, size = 0x4, scoped, tag = 'scoped memory for tpu_custom_call.1']
    #allocation8 [shape = 'u8[8192]{0}', space=vmem, size = 0x2000, scoped, tag = 'input window, operand 2, single buffered']
    #allocation9 [shape = 'u8[8192]{0}', space=vmem, size = 0x2000, scoped, tag = 'input window, operand 3, single buffered']
    #allocation10 [shape = 's32[1]{0}', space=sflag, size = 0x4, scoped, tag = 'scoped memory for tpu_custom_call.1']
    #allocation11 [shape = 'u8[512]{0}', space=vmem, size = 0x400, scoped, tag = 'output window, operand 0, single buffered']
    %14 = vsyncpa [#allocation4], 0
    %15 = vsyncpa [#allocation7], 0
    %16 = vsyncpa [#allocation10], 0
    %17 = vsyncpa [#allocation5], 0
    // Predicated region
    $region2: #{tpu_custom_call.1} parent=1 // pred_check
      _
    $region3: #{tpu_custom_call.1} parent=1 // pred_check_branch
      %19 = sbr.rel (0) target = $region5
    $region4: #{tpu_custom_call.1} parent=1 // pred_region
      %s21 = ssub.s32 128, 128
      %22 = vsyncadd [#allocation4], %s21
      %s24 = sshll.u32 [#allocation3], 4
      %s25 = int_to_ptr.vmem [resolvable:$true] %s24
      %27 = dma.hbm_to_vmem [thread:$0]  %s0, 128, %s25, [#allocation4]
    $region5: #{tpu_custom_call.1} parent=1 // pred_fallthru
      _
    // Predicated region
    $region6: #{tpu_custom_call.1} parent=1 // pred_check
      _
    $region7: #{tpu_custom_call.1} parent=1 // pred_check_branch
      %29 = sbr.rel (0) target = $region9
    $region8: #{tpu_custom_call.1} parent=1 // pred_region
      %s31 = ssub.s32 128, 128
      %32 = vsyncadd [#allocation7], %s31
      %s34 = sshll.u32 [#allocation6], 4
      %s35 = int_to_ptr.vmem [resolvable:$true] %s34
      %37 = dma.hbm_to_vmem [thread:$0]  %s1, 128, %s35, [#allocation7]
    $region9: #{tpu_custom_call.1} parent=1 // pred_fallthru
      _
    // Predicated region
    $region10: #{tpu_custom_call.1} parent=1 // pred_check
      _
    $region11: #{tpu_custom_call.1} parent=1 // pred_check_branch
      %39 = sbr.rel (0) target = $region13
    $region12: #{tpu_custom_call.1} parent=1 // pred_region
      %s41 = ssub.s32 256, 256
      %42 = vsyncadd [#allocation7], %s41
      %s43 = sshll.u32 [#allocation8], 4
      %s44 = int_to_ptr.vmem [resolvable:$true] %s43
      %49 = dma.hbm_to_vmem [thread:$0]  %s2, 256, %s44, [#allocation7], 128, 128, 8
    $region13: #{tpu_custom_call.1} parent=1 // pred_fallthru
      _
    // Predicated region
    $region14: #{tpu_custom_call.1} parent=1 // pred_check
      _
    $region15: #{tpu_custom_call.1} parent=1 // pred_check_branch
      %51 = sbr.rel (0) target = $region17
    $region16: #{tpu_custom_call.1} parent=1 // pred_region
      %s53 = ssub.s32 256, 256
      %54 = vsyncadd [#allocation10], %s53
      %s55 = sshll.u32 [#allocation9], 4
      %s56 = int_to_ptr.vmem [resolvable:$true] %s55
      %61 = dma.hbm_to_vmem [thread:$0]  %s3, 256, %s56, [#allocation10], 128, 128, 8
    $region17: #{tpu_custom_call.1} parent=1 // pred_fallthru
      _
    // Predicated region
    $region18: #{tpu_custom_call.1} parent=1 // pred_check
      _
    $region19: #{tpu_custom_call.1} parent=1 // pred_check_branch
      %63 = sbr.rel (0) target = $region21
    $region20: #{tpu_custom_call.1} parent=1 // pred_region
      _
    $region21: #{tpu_custom_call.1} parent=1 // pred_fallthru
      _
    // Predicated region
    $region22: #{tpu_custom_call.1} parent=1 // pred_check
      _
    $region23: #{tpu_custom_call.1} parent=1 // pred_check_branch
      %65 = sbr.rel (0) target = $region25
    $region24: #{tpu_custom_call.1} parent=1 // pred_region
      _
    $region25: #{tpu_custom_call.1} parent=1 // pred_fallthru
      _
    // Predicated region
    $region26: #{tpu_custom_call.1} parent=1 // pred_check
      _
    $region27: #{tpu_custom_call.1} parent=1 // pred_check_branch
      %67 = sbr.rel (0) target = $region29
    $region28: #{tpu_custom_call.1} parent=1 // pred_region
      _
    $region29: #{tpu_custom_call.1} parent=1 // pred_fallthru
      _
    // Predicated region
    $region30: #{tpu_custom_call.1} parent=1 // pred_check
      _
    $region31: #{tpu_custom_call.1} parent=1 // pred_check_branch
      %69 = sbr.rel (0) target = $region33
    $region32: #{tpu_custom_call.1} parent=1 // pred_region
      %70 = dma.done [#allocation4], 128
    $region33: #{tpu_custom_call.1} parent=1 // pred_fallthru
      _
    // Predicated region
    $region34: #{tpu_custom_call.1} parent=1 // pred_check
      _
    $region35: #{tpu_custom_call.1} parent=1 // pred_check_branch
      %72 = sbr.rel (0) target = $region37
    $region36: #{tpu_custom_call.1} parent=1 // pred_region
      %73 = dma.done [#allocation7], 128
    $region37: #{tpu_custom_call.1} parent=1 // pred_fallthru
      _
    // Predicated region
    $region38: #{tpu_custom_call.1} parent=1 // pred_check
      _
    $region39: #{tpu_custom_call.1} parent=1 // pred_check_branch
      %75 = sbr.rel (0) target = $region41
    $region40: #{tpu_custom_call.1} parent=1 // pred_region
      %76 = dma.done [#allocation7], 256
    $region41: #{tpu_custom_call.1} parent=1 // pred_fallthru
      _
    // Predicated region
    $region42: #{tpu_custom_call.1} parent=1 // pred_check
      _
    $region43: #{tpu_custom_call.1} parent=1 // pred_check_branch
      %78 = sbr.rel (0) target = $region45
    $region44: #{tpu_custom_call.1} parent=1 // pred_region
      %79 = dma.done [#allocation10], 256
    $region45: #{tpu_custom_call.1} parent=1 // pred_fallthru
      _
    %v80 = vld [vmem:[#allocation3] sm:$0xff]
    %v81 = vld [vmem:[#allocation8] sm:$0xff]
    %v82 = vld [vmem:[#allocation8 + $0x8] sm:$0xff]
    %v83 = vld [vmem:[#allocation6] sm:$0xff]
    %v84 = vld [vmem:[#allocation9] sm:$0xff]
    %v85 = vld [vmem:[#allocation9 + $0x8] sm:$0xff]
    %vm86 = vcmask 130048
    %v88 = vsel %vm86, %v83, 0
    %90 = vmatprep.subr.mxu0 0.0
    %91 = vmatpush1.msra.mxu0 0.0
    %92 = vmatprep.subr.mxu0 0.0
    %93 = vmatpush1.msra.mxu0 0.0
    %94 = vmatprep.subr.mxu0 0.0
    %95 = vmatpush1.msra.mxu0 0.0
    %96 = vmatprep.subr.mxu0 0.0
    %97 = vmatpush1.msra.mxu0 0.0
    %98 = vmatprep.subr.mxu0 0.0
    %99 = vmatpush1.msra.mxu0 0.0
    %100 = vmatprep.subr.mxu0 0.0
    %101 = vmatpush1.msra.mxu0 0.0
    %102 = vmatprep.subr.mxu0 0.0
    %103 = vmatpush1.msra.mxu0 0.0
    %104 = vmatprep.subr.mxu0 0.0
    %105 = vmatpush1.msra.mxu0 0.0
    %106 = vmatprep.subr.mxu0 0.0
    %107 = vmatpush1.msra.mxu0 0.0
    %108 = vmatprep.subr.mxu0 0.0
    %109 = vmatpush1.msra.mxu0 0.0
    %110 = vmatprep.subr.mxu0 0.0
    %111 = vmatpush1.msra.mxu0 0.0
    %112 = vmatprep.subr.mxu0 0.0
    %113 = vmatpush1.msra.mxu0 0.0
    %114 = vmatprep.subr.mxu0 0.0
    %115 = vmatpush1.msra.mxu0 0.0
    %116 = vmatprep.subr.mxu0 0.0
    %117 = vmatpush1.msra.mxu0 0.0
    %118 = vmatprep.subr.mxu0 0.0
    %119 = vmatpush1.msra.mxu0 %v85
    %120 = vmatprep.subr.mxu0 0.0
    %121 = vmatpush1.msra.mxu0 %v84
    %122 = vmatprep.subr.mxu0 0.0
    %123 = vmatpush2.msra.mxu0 0.0
    %124 = vmatprep.subr.mxu0 0.0
    %125 = vmatpush2.msra.mxu0 0.0
    %126 = vmatprep.subr.mxu0 0.0
    %127 = vmatpush2.msra.mxu0 0.0
    %128 = vmatprep.subr.mxu0 0.0
    %129 = vmatpush2.msra.mxu0 0.0
    %130 = vmatprep.subr.mxu0 0.0
    %131 = vmatpush2.msra.mxu0 0.0
    %132 = vmatprep.subr.mxu0 0.0
    %133 = vmatpush2.msra.mxu0 0.0
    %134 = vmatprep.subr.mxu0 0.0
    %135 = vmatpush2.msra.mxu0 0.0
    %136 = vmatprep.subr.mxu0 0.0
    %137 = vmatpush2.msra.mxu0 0.0
    %138 = vmatprep.subr.mxu0 0.0
    %139 = vmatpush2.msra.mxu0 0.0
    %140 = vmatprep.subr.mxu0 0.0
    %141 = vmatpush2.msra.mxu0 0.0
    %142 = vmatprep.subr.mxu0 0.0
    %143 = vmatpush2.msra.mxu0 0.0
    %144 = vmatprep.subr.mxu0 0.0
    %145 = vmatpush2.msra.mxu0 0.0
    %146 = vmatprep.subr.mxu0 0.0
    %147 = vmatpush2.msra.mxu0 0.0
    %148 = vmatprep.subr.mxu0 0.0
    %149 = vmatpush2.msra.mxu0 0.0
    %150 = vmatprep.subr.mxu0 0.0
    %151 = vmatpush2.msra.mxu0 0.0
    %152 = vmatprep.subr.mxu0 0.0
    %153 = vmatpush2.msra.mxu0 0.0
    %154 = vmatprep.mubr.f32.mxu0 0.0
    %155 = vmatmul.mubr.f32.gmra.mxu0 %v88
    %v156 = vpop.f32.mrf.mxu0
    %v157 = vadd.f32 0.0, %v156
    %v158 = vpop.f32.mrf.mxu0
    %159 = vdwg.mxu0
    %v161 = vsel %vm86, %v80, 0
    %163 = vmatprep.subr.mxu0 0.0
    %164 = vmatpush1.msra.mxu0 0.0
    %165 = vmatprep.subr.mxu0 0.0
    %166 = vmatpush1.msra.mxu0 0.0
    %167 = vmatprep.subr.mxu0 0.0
    %168 = vmatpush1.msra.mxu0 0.0
    %169 = vmatprep.subr.mxu0 0.0
    %170 = vmatpush1.msra.mxu0 0.0
    %171 = vmatprep.subr.mxu0 0.0
    %172 = vmatpush1.msra.mxu0 0.0
    %173 = vmatprep.subr.mxu0 0.0
    %174 = vmatpush1.msra.mxu0 0.0
    %175 = vmatprep.subr.mxu0 0.0
    %176 = vmatpush1.msra.mxu0 0.0
    %177 = vmatprep.subr.mxu0 0.0
    %178 = vmatpush1.msra.mxu0 0.0
    %179 = vmatprep.subr.mxu0 0.0
    %180 = vmatpush1.msra.mxu0 0.0
    %181 = vmatprep.subr.mxu0 0.0
    %182 = vmatpush1.msra.mxu0 0.0
    %183 = vmatprep.subr.mxu0 0.0
    %184 = vmatpush1.msra.mxu0 0.0
    %185 = vmatprep.subr.mxu0 0.0
    %186 = vmatpush1.msra.mxu0 0.0
    %187 = vmatprep.subr.mxu0 0.0
    %188 = vmatpush1.msra.mxu0 0.0
    %189 = vmatprep.subr.mxu0 0.0
    %190 = vmatpush1.msra.mxu0 0.0
    %191 = vmatprep.subr.mxu0 0.0
    %192 = vmatpush1.msra.mxu0 %v82
    %193 = vmatprep.subr.mxu0 0.0
    %194 = vmatpush1.msra.mxu0 %v81
    %195 = vmatprep.subr.mxu0 0.0
    %196 = vmatpush2.msra.mxu0 0.0
    %197 = vmatprep.subr.mxu0 0.0
    %198 = vmatpush2.msra.mxu0 0.0
    %199 = vmatprep.subr.mxu0 0.0
    %200 = vmatpush2.msra.mxu0 0.0
    %201 = vmatprep.subr.mxu0 0.0
    %202 = vmatpush2.msra.mxu0 0.0
    %203 = vmatprep.subr.mxu0 0.0
    %204 = vmatpush2.msra.mxu0 0.0
    %205 = vmatprep.subr.mxu0 0.0
    %206 = vmatpush2.msra.mxu0 0.0
    %207 = vmatprep.subr.mxu0 0.0
    %208 = vmatpush2.msra.mxu0 0.0
    %209 = vmatprep.subr.mxu0 0.0
    %210 = vmatpush2.msra.mxu0 0.0
    %211 = vmatprep.subr.mxu0 0.0
    %212 = vmatpush2.msra.mxu0 0.0
    %213 = vmatprep.subr.mxu0 0.0
    %214 = vmatpush2.msra.mxu0 0.0
    %215 = vmatprep.subr.mxu0 0.0
    %216 = vmatpush2.msra.mxu0 0.0
    %217 = vmatprep.subr.mxu0 0.0
    %218 = vmatpush2.msra.mxu0 0.0
    %219 = vmatprep.subr.mxu0 0.0
    %220 = vmatpush2.msra.mxu0 0.0
    %221 = vmatprep.subr.mxu0 0.0
    %222 = vmatpush2.msra.mxu0 0.0
    %223 = vmatprep.subr.mxu0 0.0
    %224 = vmatpush2.msra.mxu0 0.0
    %225 = vmatprep.subr.mxu0 0.0
    %226 = vmatpush2.msra.mxu0 0.0
    %227 = vmatprep.mubr.f32.mxu0 0.0
    %228 = vmatmul.mubr.f32.gmra.mxu0 %v161
    %v229 = vpop.f32.mrf.mxu0
    %v230 = vadd.f32 %v157, %v229
    %v231 = vpop.f32.mrf.mxu0
    %232 = vdwg.mxu0
    %v233 = vld [vmem:[%s4] sm:$0x1]
    %v235 = vlaneseq
    %v236 = vshrl.u32 %v235, 7
    %v237 = vsub.s32 0, %v236
    %v238 = vrot.slane %v233, %v237
    %v240 = vadd.f32 %v230, %v238
    %v241 = vmul.f32 %v240, 0.01
    %v242 = vmax.f32 %v240, %v241
    %v243 = vld [vmem:[%s5] sm:$0xff]
    %244 = vmatprep.subr.mxu0 0.0
    %245 = vmatpush1.xpose.msra.mxu0 0.0
    %246 = vmatprep.subr.mxu0 0.0
    %247 = vmatpush1.xpose.msra.mxu0 0.0
    %248 = vmatprep.subr.mxu0 0.0
    %249 = vmatpush1.xpose.msra.mxu0 0.0
    %250 = vmatprep.subr.mxu0 0.0
    %251 = vmatpush1.xpose.msra.mxu0 0.0
    %252 = vmatprep.subr.mxu0 0.0
    %253 = vmatpush1.xpose.msra.mxu0 0.0
    %254 = vmatprep.subr.mxu0 0.0
    %255 = vmatpush1.xpose.msra.mxu0 0.0
    %256 = vmatprep.subr.mxu0 0.0
    %257 = vmatpush1.xpose.msra.mxu0 0.0
    %258 = vmatprep.subr.mxu0 0.0
    %259 = vmatpush1.xpose.msra.mxu0 0.0
    %260 = vmatprep.subr.mxu0 0.0
    %261 = vmatpush1.xpose.msra.mxu0 0.0
    %262 = vmatprep.subr.mxu0 0.0
    %263 = vmatpush1.xpose.msra.mxu0 0.0
    %264 = vmatprep.subr.mxu0 0.0
    %265 = vmatpush1.xpose.msra.mxu0 0.0
    %266 = vmatprep.subr.mxu0 0.0
    %267 = vmatpush1.xpose.msra.mxu0 0.0
    %268 = vmatprep.subr.mxu0 0.0
    %269 = vmatpush1.xpose.msra.mxu0 0.0
    %270 = vmatprep.subr.mxu0 0.0
    %271 = vmatpush1.xpose.msra.mxu0 0.0
    %272 = vmatprep.subr.mxu0 0.0
    %273 = vmatpush1.xpose.msra.mxu0 0.0
    %274 = vmatprep.subr.mxu0 0.0
    %275 = vmatpush1.xpose.msra.mxu0 %v242
    %276 = vmatprep.subr.mxu0 0.0
    %277 = vmatpush2.xpose.msra.mxu0 0.0
    %278 = vmatprep.subr.mxu0 0.0
    %279 = vmatpush2.xpose.msra.mxu0 0.0
    %280 = vmatprep.subr.mxu0 0.0
    %281 = vmatpush2.xpose.msra.mxu0 0.0
    %282 = vmatprep.subr.mxu0 0.0
    %283 = vmatpush2.xpose.msra.mxu0 0.0
    %284 = vmatprep.subr.mxu0 0.0
    %285 = vmatpush2.xpose.msra.mxu0 0.0
    %286 = vmatprep.subr.mxu0 0.0
    %287 = vmatpush2.xpose.msra.mxu0 0.0
    %288 = vmatprep.subr.mxu0 0.0
    %289 = vmatpush2.xpose.msra.mxu0 0.0
    %290 = vmatprep.subr.mxu0 0.0
    %291 = vmatpush2.xpose.msra.mxu0 0.0
    %292 = vmatprep.subr.mxu0 0.0
    %293 = vmatpush2.xpose.msra.mxu0 0.0
    %294 = vmatprep.subr.mxu0 0.0
    %295 = vmatpush2.xpose.msra.mxu0 0.0
    %296 = vmatprep.subr.mxu0 0.0
    %297 = vmatpush2.xpose.msra.mxu0 0.0
    %298 = vmatprep.subr.mxu0 0.0
    %299 = vmatpush2.xpose.msra.mxu0 0.0
    %300 = vmatprep.subr.mxu0 0.0
    %301 = vmatpush2.xpose.msra.mxu0 0.0
    %302 = vmatprep.subr.mxu0 0.0
    %303 = vmatpush2.xpose.msra.mxu0 0.0
    %304 = vmatprep.subr.mxu0 0.0
    %305 = vmatpush2.xpose.msra.mxu0 0.0
    %306 = vmatprep.subr.mxu0 0.0
    %307 = vmatpush2.xpose.msra.mxu0 0.0
    %308 = vmatprep.mubr.f32.mxu0 0.0
    %309 = vmatmul.mubr.f32.gmra.mxu0 %v243
    %v310 = vpop.f32.mrf.mxu0
    %v311 = vadd.f32 0.0, %v310
    %v312 = vpop.f32.mrf.mxu0
    %313 = vdwg.mxu0
    %v314 = vld [vmem:[#allocation2] sm:$0x1]
    %316 = vset.pattern.permute.xlu0 0
    %317 = vperm.xlu0 %316, %v314
    %v318 = vpop.permute.xlu0 %317
    %v320 = vlaneseq
    %v321 = vshrl.u32 %v320, 7
    %v322 = vsub.s32 0, %v321
    %v323 = vrot.slane %v318, %v322
    %v324 = vadd.f32 %v311, %v323
    %v325 = vsub.f32 0.0, %v324
    %v326 = vmul.f32 %v325, 1.442695
    %v327 = vpow.pop %v326
    %v328 = vadd.f32 %v327, 1.0
    %v329 = vrcp.pop %v328
    %v330 = vmul.f32 1.0, %v329
    %vm331 = vcmask 57344
    %332 = vst.msk [vmem:[#allocation11] sm:$0x1] %vm331, %v330
    // Predicated region
    $region46: #{tpu_custom_call.1} parent=1 // pred_check
      _
    $region47: #{tpu_custom_call.1} parent=1 // pred_check_branch
      %334 = sbr.rel (0) target = $region49
    $region48: #{tpu_custom_call.1} parent=1 // pred_region
      %s336 = ssub.s32 16, 16
      %337 = vsyncadd [#allocation5], %s336
      %s339 = sshll.u32 [#allocation11], 4
      %s340 = int_to_ptr.vmem [resolvable:$true] %s339
      %342 = dma.vmem_to_hbm [thread:$0]  %s340, 16, %s7, [#allocation5]
    $region49: #{tpu_custom_call.1} parent=1 // pred_fallthru
      _
    // Predicated region
    $region50: #{tpu_custom_call.1} parent=1 // pred_check
      _
    $region51: #{tpu_custom_call.1} parent=1 // pred_check_branch
      %344 = sbr.rel (0) target = $region53
    $region52: #{tpu_custom_call.1} parent=1 // pred_region
      %345 = dma.done [#allocation5], 16
    $region53: #{tpu_custom_call.1} parent=1 // pred_fallthru
      _
    %346 = vsyncpa [#allocation4], 1
    %347 = vsyncpa [#allocation7], 1
    %348 = vsyncpa [#allocation10], 1
    %349 = vsyncpa [#allocation5], 1

</llo_original>
